<compile_context>
chip_gen: v7x
topology: tpu7x:2x2x1
jax: 0.10.0
libtpu: 0.0.40
codegen_flags: <defaults>
</compile_context>

<pallas_src>
import jax
import jax.numpy as jnp
import numpy as np
from jax.experimental import pallas as pl
from jax.experimental.pallas import tpu as pltpu

expand = 1
ALL = 3.0 * expand
RATIO1 = 0.03
RATIO2 = 0.01
G = 6     # number of status groups
S = 4     # elements per group
SUBS = 4  # batch rows folded into the sublane axis (6*4 = 24 sublanes)


def _recall_kernel(pre_ref, tar_ref, out_ref):
    # Element-k slices of the (4, 24, TB) block: each (24, TB) f32, rows are
    # group-major (row = g*4 + batch_sub), batch lanes on the 128-lane axis.
    ps = [pre_ref[k] for k in range(S)]
    ts = [tar_ref[k] for k in range(S)]

    # ---- softmax numerators (no division anywhere in the kernel) -----------
    m = jnp.maximum(jnp.maximum(ps[0], ps[1]), jnp.maximum(ps[2], ps[3]))
    es = [jnp.exp(p - m) for p in ps]
    denom = (es[0] + es[1]) + (es[2] + es[3])

    # ---- stable ascending ranks (inverse of stable argsort) ----------------
    # 6 compares per tensor; complementary pair contributions derived by 1 - c.
    def ranks4(xs):
        c01 = (xs[0] <= xs[1]).astype(jnp.int32)
        c02 = (xs[0] <= xs[2]).astype(jnp.int32)
        c03 = (xs[0] <= xs[3]).astype(jnp.int32)
        c12 = (xs[1] <= xs[2]).astype(jnp.int32)
        c13 = (xs[1] <= xs[3]).astype(jnp.int32)
        c23 = (xs[2] <= xs[3]).astype(jnp.int32)
        r0 = (3 - c01) - (c02 + c03)
        r1 = (2 + c01) - (c12 + c13)
        r2 = (1 - c23) + (c02 + c12)
        r3 = (c03 + c13) + c23
        return [r0, r1, r2, r3]

    # Ranks of out = 3*e/denom equal ranks of e (positive rescale), so rank
    # directly on the exp numerators and never materialize the division.
    rank_o = ranks4(es)
    rank_t = ranks4(ts)
    eq = [rank_o[k] == rank_t[k] for k in range(S)]

    # ---- sorted target values via a 4-element min/max sorting network ------
    lo01 = jnp.minimum(ts[0], ts[1]); hi01 = jnp.maximum(ts[0], ts[1])
    lo23 = jnp.minimum(ts[2], ts[3]); hi23 = jnp.maximum(ts[2], ts[3])
    st0 = jnp.minimum(lo01, lo23)
    mid_lo = jnp.maximum(lo01, lo23)
    mid_hi = jnp.minimum(hi01, hi23)
    st1 = jnp.minimum(mid_lo, mid_hi)
    st2 = jnp.maximum(mid_lo, mid_hi)

    err2 = ALL * RATIO2
    d1 = (st1 - st0) < err2          # sorted ascending -> abs() not needed
    d2 = (st2 - st1) < err2

    # ---- judge_reall --------------------------------------------------------
    # |3*e_k/denom - t_k| <= err1  <=>  |3*e_k - t_k*denom| <= err1*denom
    err1d = (ALL * RATIO1) * denom
    close = ((jnp.abs(ALL * es[0] - ts[0] * denom) <= err1d) &
             (jnp.abs(ALL * es[1] - ts[1] * denom) <= err1d) &
             (jnp.abs(ALL * es[2] - ts[2] * denom) <= err1d) &
             (jnp.abs(ALL * es[3] - ts[3] * denom) <= err1d))
    jump = close & ((d1 & d2) | (d1 & eq[2]) | (d2 & eq[0]))

    # ---- per-group recall decisions (boolean mask algebra) ------------------
    nz = ((ts[0] == 0.0).astype(jnp.int32) + (ts[1] == 0.0).astype(jnp.int32) +
          (ts[2] == 0.0).astype(jnp.int32) + (ts[3] == 0.0).astype(jnp.int32))

    order_all = (eq[0] & eq[1]) & (eq[2] & eq[3])

    # "same original index sits at sorted position pos in both" — exactly one
    # k has rank_t[k]==pos, so this reduces to (rank_t[k]==pos) & eq[k].
    def pos_match(pos):
        mm = (rank_t[0] == pos) & eq[0]
        for k in range(1, S):
            mm = mm | ((rank_t[k] == pos) & eq[k])
        return mm

    hit2 = pos_match(2) & pos_match(3)
    top_is_3 = rank_o[3] == 3   # argsort(out)[3] >= 2.7 (index test, bug-compat)

    b2 = (nz == 2) & hit2
    b3 = (nz == 3) & top_is_3
    few0 = nz < 2
    calc_g = (jump | few0) | (b2 | b3)
    acc_g = (jump | (few0 & order_all)) | (b2 | b3)

    acc_f = acc_g.astype(jnp.float32)
    calc_f = calc_g.astype(jnp.float32)

    # Sum over the 6 groups (rows g*4 + sub) -> (4, TB) per-batch-row sums.
    def gsum(x):
        return ((x[0:4] + x[4:8]) + (x[8:12] + x[12:16])) + (x[16:20] + x[20:24])

    out_ref[0] = gsum(acc_f)    # per-batch acc_recall
    out_ref[1] = gsum(calc_f)   # per-batch calc_num


@jax.jit
def test_recall_pallas(pre, tar):
    """pre, tar: (B, 25) float32  ->  scalar recall 'loss'."""
    pre = pre.astype(jnp.float32)
    tar = tar.astype(jnp.float32)
    B = pre.shape[0]

    # Each lane column carries SUBS=4 batch rows stacked on the sublane axis.
    lanes = (B + SUBS - 1) // SUBS
    if lanes <= 256:
        TB = ((lanes + 127) // 128) * 128            # single small step
    else:
        # >=2 grid steps (v7x megacore), capped at 2048 lanes (=8192 rows)/step
        half = 128 * ((lanes + 255) // 256)          # round_up(lanes/2, 128)
        TB = min(2048, half)
    L = ((lanes + TB - 1) // TB) * TB                # total lanes (padded)
    B_pad = SUBS * L
    grid = L // TB

    # (B,24) -> (4_elem, 24 = 6 groups x 4 subrows, L lanes); batch b maps to
    # (sub = b // L, lane = b % L).  Padded rows are all-zero (they produce
    # calc==0 and are also sliced off in the epilogue).
    def pack(x):
        x = x[:, :24].reshape(B, G, S)
        x = jnp.pad(x, ((0, B_pad - B), (0, 0), (0, 0)))
        x = x.reshape(SUBS, L, G, S)
        x = jnp.transpose(x, (3, 2, 0, 1))           # (S, G, SUBS, L)
        return x.reshape(S, G * SUBS, L)

    pre_t = pack(pre)
    tar_t = pack(tar)

    out = pl.pallas_call(
        _recall_kernel,
        out_shape=jax.ShapeDtypeStruct((2, SUBS, L), jnp.float32),
        grid=(grid,),
        in_specs=[
            pl.BlockSpec((S, G * SUBS, TB), lambda i: (0, 0, i)),
            pl.BlockSpec((S, G * SUBS, TB), lambda i: (0, 0, i)),
        ],
        out_specs=pl.BlockSpec((2, SUBS, TB), lambda i: (0, 0, i)),
        compiler_params=pltpu.CompilerParams(
            dimension_semantics=("parallel",),
            vmem_limit_bytes=32 * 1024 * 1024),
    )(pre_t, tar_t)

    # Tiny B->1 reduction (with the calc==0 batch-drop rule) in XLA glue;
    # flatten (sub, lane) back to batch order and drop padded rows.
    acc_b = out[0].reshape(-1)[:B]
    calc_b = out[1].reshape(-1)[:B]
    valid = calc_b > 0.0
    per_batch = jnp.where(valid, acc_b / jnp.where(valid, calc_b, 1.0), 0.0)
    eff = jnp.sum(valid.astype(jnp.float32))
    loss = jnp.where(eff > 0.0,
                     jnp.sum(per_batch) / jnp.where(eff > 0.0, eff, 1.0),
                     0.0)
    return loss


# ---------------- pure-numpy reference (mirrors the PyTorch code) ----------
def _judge_reall_ref(all_, r1, r2, out, tar):
    error = all_ * r1
    if int(np.sum(np.abs(out - tar) <= error)) != 4:
        return False
    tagtar = np.argsort(tar, kind="stable")
    sort_tar = tar[tagtar]
    tagout = np.argsort(out, kind="stable")
    diff1 = abs(sort_tar[0] - sort_tar[1])
    diff2 = abs(sort_tar[2] - sort_tar[1])
    if diff1 < all_ * r2 and diff2 < all_ * r2:
        return True
    if diff1 < all_ * r2:
        if int(np.nonzero(tagout == 2)[0][0]) == int(np.nonzero(tagtar == 2)[0][0]):
            return True
    if diff2 < all_ * r2:
        if int(np.nonzero(tagout == 0)[0][0]) == int(np.nonzero(tagtar == 0)[0][0]):
            return True
    return False


def _reference_loss(pre, tar):
    pre = np.asarray(pre, np.float32)
    tar = np.asarray(tar, np.float32)
    loss = 0.0
    batchsize = tar.shape[0]
    for j in range(tar.shape[0]):
        prenew, tarnew = pre[j], tar[j]
        out = np.zeros(25, np.float32)
        for i in range(6):
            g = prenew[i * 4:(i + 1) * 4]
            e = np.exp(g - g.max())
            out[i * 4:(i + 1) * 4] = ALL * e / e.sum()
        out[24] = max(float(prenew[24]), 0.0)
        acc, calc = 0, 0
        for i in range(6):
            t = tarnew[i * 4:(i + 1) * 4]
            o = out[i * 4:(i + 1) * 4]
            if _judge_reall_ref(ALL, RATIO1, RATIO2, o, t):
                calc += 1
                acc += 1
            else:
                nzc = int(np.sum(t == 0.0))
                s1 = np.argsort(o, kind="stable")
                s2 = np.argsort(t, kind="stable")
                if nzc < 2:
                    calc += 1
                    if np.all(s1 == s2):
                        acc += 1
                else:
                    if nzc == 2:
                        if s1[2] == s2[2] and s1[3] == s2[3]:
                            calc += 1
                            acc += 1
                    if nzc == 3:
                        if s1[3] >= ALL * 0.9:
                            calc += 1
                            acc += 1
        if calc != 0:
            loss += acc / calc
        else:
            batchsize -= 1
    if batchsize == 0:
        return 0.0
    return loss / batchsize


if __name__ == "__main__":
    key = jax.random.PRNGKey(0)
    k1, k2, k3, k4 = jax.random.split(key, 4)

    def run_case(pre, tar):
        loss = jax.block_until_ready(
            test_recall_pallas(jnp.asarray(pre), jnp.asarray(tar)))
        ref = _reference_loss(pre, tar)
        assert np.isfinite(float(loss)), "kernel produced non-finite loss"
        assert abs(float(loss) - float(ref)) < 1e-5, (float(loss), float(ref))

    # Case 1: B=2, crafted jump / nz==2 / nz==3 branches.
    B = 2
    pre = np.array(jax.random.normal(k1, (B, 25), dtype=jnp.float32))
    raw = np.array(jax.nn.softmax(
        jax.random.normal(k2, (B, 6, 4), dtype=jnp.float32), axis=-1)) * ALL
    raw[0, 1, :2] = 0.0
    raw[0, 2, :3] = 0.0
    raw[1, 3, :2] = 0.0
    raw[1, 4, :3] = 0.0
    tar = np.zeros((B, 25), np.float32)
    tar[:, :24] = raw.reshape(B, 24).astype(np.float32)
    tar[:, 24] = 1.0
    # Make batch-0 group-0 prediction nearly exact (exercises the jump path).
    pre[0, 0:4] = np.log(tar[0, 0:4])
    run_case(pre.astype(np.float32), tar)

    # Case 2: B=7 (not a multiple of the 4-row sublane fold), zeros in several
    # groups and one batch with all-zero target (calc==0 -> dropped).
    B = 7
    pre = np.array(jax.random.normal(k3, (B, 25), dtype=jnp.float32))
    raw = np.array(jax.nn.softmax(
        jax.random.normal(k4, (B, 6, 4), dtype=jnp.float32), axis=-1)) * ALL
    raw[1, 0, :2] = 0.0
    raw[2, 5, :3] = 0.0
    raw[4, 2, :2] = 0.0
    tar = np.zeros((B, 25), np.float32)
    tar[:, :24] = raw.reshape(B, 24).astype(np.float32)
    tar[:, 24] = 1.0
    tar[3, :] = 0.0
    run_case(pre.astype(np.float32), tar)

    print("KERNEL_OK")
</pallas_src>

<mosaic_0001>
module attributes {stable_mosaic.version = 11 : i64} {
  func.func @_recall_kernel(%arg0: i32, %arg1: memref<4x24x128xf32, #tpu.memory_space<vmem>>, %arg2: memref<4x24x128xf32, #tpu.memory_space<vmem>>, %arg3: memref<2x4x128xf32, #tpu.memory_space<vmem>>) attributes {dimension_semantics = [#tpu.dimension_semantics<parallel>], iteration_bounds = array<i64: 1>, scalar_prefetch = 0 : i64, scratch_operands = 0 : i64, tpu.core_type = #tpu.core_type<tc>, window_params = [{transform_indices = @transform_0, window_bounds = array<i64: 4, 24, 128>}, {transform_indices = @transform_1, window_bounds = array<i64: 4, 24, 128>}, {transform_indices = @transform_2, window_bounds = array<i64: 2, 4, 128>}]} {
    %c0 = arith.constant 0 : index
    %c0_0 = arith.constant 0 : index
    %c0_1 = arith.constant 0 : index
    %0 = vector.load %arg1[%c0, %c0_0, %c0_1] : memref<4x24x128xf32, #tpu.memory_space<vmem>>, vector<1x24x128xf32>
    %1 = vector.shape_cast %0 : vector<1x24x128xf32> to vector<24x128xf32>
    %c1 = arith.constant 1 : index
    %c0_2 = arith.constant 0 : index
    %c0_3 = arith.constant 0 : index
    %2 = vector.load %arg1[%c1, %c0_2, %c0_3] : memref<4x24x128xf32, #tpu.memory_space<vmem>>, vector<1x24x128xf32>
    %3 = vector.shape_cast %2 : vector<1x24x128xf32> to vector<24x128xf32>
    %c2 = arith.constant 2 : index
    %c0_4 = arith.constant 0 : index
    %c0_5 = arith.constant 0 : index
    %4 = vector.load %arg1[%c2, %c0_4, %c0_5] : memref<4x24x128xf32, #tpu.memory_space<vmem>>, vector<1x24x128xf32>
    %5 = vector.shape_cast %4 : vector<1x24x128xf32> to vector<24x128xf32>
    %c3 = arith.constant 3 : index
    %c0_6 = arith.constant 0 : index
    %c0_7 = arith.constant 0 : index
    %6 = vector.load %arg1[%c3, %c0_6, %c0_7] : memref<4x24x128xf32, #tpu.memory_space<vmem>>, vector<1x24x128xf32>
    %7 = vector.shape_cast %6 : vector<1x24x128xf32> to vector<24x128xf32>
    %c0_8 = arith.constant 0 : index
    %c0_9 = arith.constant 0 : index
    %c0_10 = arith.constant 0 : index
    %8 = vector.load %arg2[%c0_8, %c0_9, %c0_10] : memref<4x24x128xf32, #tpu.memory_space<vmem>>, vector<1x24x128xf32>
    %9 = vector.shape_cast %8 : vector<1x24x128xf32> to vector<24x128xf32>
    %c1_11 = arith.constant 1 : index
    %c0_12 = arith.constant 0 : index
    %c0_13 = arith.constant 0 : index
    %10 = vector.load %arg2[%c1_11, %c0_12, %c0_13] : memref<4x24x128xf32, #tpu.memory_space<vmem>>, vector<1x24x128xf32>
    %11 = vector.shape_cast %10 : vector<1x24x128xf32> to vector<24x128xf32>
    %c2_14 = arith.constant 2 : index
    %c0_15 = arith.constant 0 : index
    %c0_16 = arith.constant 0 : index
    %12 = vector.load %arg2[%c2_14, %c0_15, %c0_16] : memref<4x24x128xf32, #tpu.memory_space<vmem>>, vector<1x24x128xf32>
    %13 = vector.shape_cast %12 : vector<1x24x128xf32> to vector<24x128xf32>
    %c3_17 = arith.constant 3 : index
    %c0_18 = arith.constant 0 : index
    %c0_19 = arith.constant 0 : index
    %14 = vector.load %arg2[%c3_17, %c0_18, %c0_19] : memref<4x24x128xf32, #tpu.memory_space<vmem>>, vector<1x24x128xf32>
    %15 = vector.shape_cast %14 : vector<1x24x128xf32> to vector<24x128xf32>
    %16 = arith.maximumf %1, %3 : vector<24x128xf32>
    %17 = arith.maximumf %5, %7 : vector<24x128xf32>
    %18 = arith.maximumf %16, %17 : vector<24x128xf32>
    %19 = arith.subf %1, %18 : vector<24x128xf32>
    %20 = math.exp %19 : vector<24x128xf32>
    %21 = arith.subf %3, %18 : vector<24x128xf32>
    %22 = math.exp %21 : vector<24x128xf32>
    %23 = arith.subf %5, %18 : vector<24x128xf32>
    %24 = math.exp %23 : vector<24x128xf32>
    %25 = arith.subf %7, %18 : vector<24x128xf32>
    %26 = math.exp %25 : vector<24x128xf32>
    %27 = arith.addf %20, %22 : vector<24x128xf32>
    %28 = arith.addf %24, %26 : vector<24x128xf32>
    %29 = arith.addf %27, %28 : vector<24x128xf32>
    %30 = arith.cmpf ole, %20, %22 : vector<24x128xf32>
    %31 = arith.extui %30 : vector<24x128xi1> to vector<24x128xi32>
    %32 = arith.cmpf ole, %20, %24 : vector<24x128xf32>
    %33 = arith.extui %32 : vector<24x128xi1> to vector<24x128xi32>
    %34 = arith.cmpf ole, %20, %26 : vector<24x128xf32>
    %35 = arith.extui %34 : vector<24x128xi1> to vector<24x128xi32>
    %36 = arith.cmpf ole, %22, %24 : vector<24x128xf32>
    %37 = arith.extui %36 : vector<24x128xi1> to vector<24x128xi32>
    %38 = arith.cmpf ole, %22, %26 : vector<24x128xf32>
    %39 = arith.extui %38 : vector<24x128xi1> to vector<24x128xi32>
    %40 = arith.cmpf ole, %24, %26 : vector<24x128xf32>
    %41 = arith.extui %40 : vector<24x128xi1> to vector<24x128xi32>
    %c3_i32 = arith.constant 3 : i32
    %42 = vector.broadcast %c3_i32 : i32 to vector<24x128xi32>
    %43 = arith.subi %42, %31 : vector<24x128xi32>
    %44 = arith.addi %33, %35 : vector<24x128xi32>
    %45 = arith.subi %43, %44 : vector<24x128xi32>
    %c2_i32 = arith.constant 2 : i32
    %46 = vector.broadcast %c2_i32 : i32 to vector<24x128xi32>
    %47 = arith.addi %46, %31 : vector<24x128xi32>
    %48 = arith.addi %37, %39 : vector<24x128xi32>
    %49 = arith.subi %47, %48 : vector<24x128xi32>
    %c1_i32 = arith.constant 1 : i32
    %50 = vector.broadcast %c1_i32 : i32 to vector<24x128xi32>
    %51 = arith.subi %50, %41 : vector<24x128xi32>
    %52 = arith.addi %33, %37 : vector<24x128xi32>
    %53 = arith.addi %51, %52 : vector<24x128xi32>
    %54 = arith.addi %35, %39 : vector<24x128xi32>
    %55 = arith.addi %54, %41 : vector<24x128xi32>
    %56 = arith.cmpf ole, %9, %11 : vector<24x128xf32>
    %57 = arith.extui %56 : vector<24x128xi1> to vector<24x128xi32>
    %58 = arith.cmpf ole, %9, %13 : vector<24x128xf32>
    %59 = arith.extui %58 : vector<24x128xi1> to vector<24x128xi32>
    %60 = arith.cmpf ole, %9, %15 : vector<24x128xf32>
    %61 = arith.extui %60 : vector<24x128xi1> to vector<24x128xi32>
    %62 = arith.cmpf ole, %11, %13 : vector<24x128xf32>
    %63 = arith.extui %62 : vector<24x128xi1> to vector<24x128xi32>
    %64 = arith.cmpf ole, %11, %15 : vector<24x128xf32>
    %65 = arith.extui %64 : vector<24x128xi1> to vector<24x128xi32>
    %66 = arith.cmpf ole, %13, %15 : vector<24x128xf32>
    %67 = arith.extui %66 : vector<24x128xi1> to vector<24x128xi32>
    %c3_i32_20 = arith.constant 3 : i32
    %68 = vector.broadcast %c3_i32_20 : i32 to vector<24x128xi32>
    %69 = arith.subi %68, %57 : vector<24x128xi32>
    %70 = arith.addi %59, %61 : vector<24x128xi32>
    %71 = arith.subi %69, %70 : vector<24x128xi32>
    %c2_i32_21 = arith.constant 2 : i32
    %72 = vector.broadcast %c2_i32_21 : i32 to vector<24x128xi32>
    %73 = arith.addi %72, %57 : vector<24x128xi32>
    %74 = arith.addi %63, %65 : vector<24x128xi32>
    %75 = arith.subi %73, %74 : vector<24x128xi32>
    %c1_i32_22 = arith.constant 1 : i32
    %76 = vector.broadcast %c1_i32_22 : i32 to vector<24x128xi32>
    %77 = arith.subi %76, %67 : vector<24x128xi32>
    %78 = arith.addi %59, %63 : vector<24x128xi32>
    %79 = arith.addi %77, %78 : vector<24x128xi32>
    %80 = arith.addi %61, %65 : vector<24x128xi32>
    %81 = arith.addi %80, %67 : vector<24x128xi32>
    %82 = arith.cmpi eq, %45, %71 : vector<24x128xi32>
    %83 = arith.cmpi eq, %49, %75 : vector<24x128xi32>
    %84 = arith.cmpi eq, %53, %79 : vector<24x128xi32>
    %85 = arith.cmpi eq, %55, %81 : vector<24x128xi32>
    %86 = arith.minimumf %9, %11 : vector<24x128xf32>
    %87 = arith.maximumf %9, %11 : vector<24x128xf32>
    %88 = arith.minimumf %13, %15 : vector<24x128xf32>
    %89 = arith.maximumf %13, %15 : vector<24x128xf32>
    %90 = arith.minimumf %86, %88 : vector<24x128xf32>
    %91 = arith.maximumf %86, %88 : vector<24x128xf32>
    %92 = arith.minimumf %87, %89 : vector<24x128xf32>
    %93 = arith.minimumf %91, %92 : vector<24x128xf32>
    %94 = arith.maximumf %91, %92 : vector<24x128xf32>
    %95 = arith.subf %93, %90 : vector<24x128xf32>
    %cst = arith.constant 3.000000e-02 : f32
    %96 = vector.broadcast %cst : f32 to vector<24x128xf32>
    %97 = arith.cmpf olt, %95, %96 : vector<24x128xf32>
    %98 = arith.subf %94, %93 : vector<24x128xf32>
    %cst_23 = arith.constant 3.000000e-02 : f32
    %99 = vector.broadcast %cst_23 : f32 to vector<24x128xf32>
    %100 = arith.cmpf olt, %98, %99 : vector<24x128xf32>
    %cst_24 = arith.constant 9.000000e-02 : f32
    %101 = vector.broadcast %cst_24 : f32 to vector<24x128xf32>
    %102 = arith.mulf %101, %29 : vector<24x128xf32>
    %cst_25 = arith.constant 3.000000e+00 : f32
    %103 = vector.broadcast %cst_25 : f32 to vector<24x128xf32>
    %104 = arith.mulf %103, %20 : vector<24x128xf32>
    %105 = arith.mulf %9, %29 : vector<24x128xf32>
    %106 = arith.subf %104, %105 : vector<24x128xf32>
    %107 = math.absf %106 : vector<24x128xf32>
    %108 = arith.cmpf ole, %107, %102 : vector<24x128xf32>
    %cst_26 = arith.constant 3.000000e+00 : f32
    %109 = vector.broadcast %cst_26 : f32 to vector<24x128xf32>
    %110 = arith.mulf %109, %22 : vector<24x128xf32>
    %111 = arith.mulf %11, %29 : vector<24x128xf32>
    %112 = arith.subf %110, %111 : vector<24x128xf32>
    %113 = math.absf %112 : vector<24x128xf32>
    %114 = arith.cmpf ole, %113, %102 : vector<24x128xf32>
    %115 = arith.andi %108, %114 : vector<24x128xi1>
    %cst_27 = arith.constant 3.000000e+00 : f32
    %116 = vector.broadcast %cst_27 : f32 to vector<24x128xf32>
    %117 = arith.mulf %116, %24 : vector<24x128xf32>
    %118 = arith.mulf %13, %29 : vector<24x128xf32>
    %119 = arith.subf %117, %118 : vector<24x128xf32>
    %120 = math.absf %119 : vector<24x128xf32>
    %121 = arith.cmpf ole, %120, %102 : vector<24x128xf32>
    %122 = arith.andi %115, %121 : vector<24x128xi1>
    %cst_28 = arith.constant 3.000000e+00 : f32
    %123 = vector.broadcast %cst_28 : f32 to vector<24x128xf32>
    %124 = arith.mulf %123, %26 : vector<24x128xf32>
    %125 = arith.mulf %15, %29 : vector<24x128xf32>
    %126 = arith.subf %124, %125 : vector<24x128xf32>
    %127 = math.absf %126 : vector<24x128xf32>
    %128 = arith.cmpf ole, %127, %102 : vector<24x128xf32>
    %129 = arith.andi %122, %128 : vector<24x128xi1>
    %130 = arith.andi %97, %100 : vector<24x128xi1>
    %131 = arith.andi %97, %84 : vector<24x128xi1>
    %132 = arith.ori %130, %131 : vector<24x128xi1>
    %133 = arith.andi %100, %82 : vector<24x128xi1>
    %134 = arith.ori %132, %133 : vector<24x128xi1>
    %135 = arith.andi %129, %134 : vector<24x128xi1>
    %cst_29 = arith.constant 0.000000e+00 : f32
    %136 = vector.broadcast %cst_29 : f32 to vector<24x128xf32>
    %137 = arith.cmpf oeq, %9, %136 : vector<24x128xf32>
    %138 = arith.extui %137 : vector<24x128xi1> to vector<24x128xi32>
    %cst_30 = arith.constant 0.000000e+00 : f32
    %139 = vector.broadcast %cst_30 : f32 to vector<24x128xf32>
    %140 = arith.cmpf oeq, %11, %139 : vector<24x128xf32>
    %141 = arith.extui %140 : vector<24x128xi1> to vector<24x128xi32>
    %142 = arith.addi %138, %141 : vector<24x128xi32>
    %cst_31 = arith.constant 0.000000e+00 : f32
    %143 = vector.broadcast %cst_31 : f32 to vector<24x128xf32>
    %144 = arith.cmpf oeq, %13, %143 : vector<24x128xf32>
    %145 = arith.extui %144 : vector<24x128xi1> to vector<24x128xi32>
    %146 = arith.addi %142, %145 : vector<24x128xi32>
    %cst_32 = arith.constant 0.000000e+00 : f32
    %147 = vector.broadcast %cst_32 : f32 to vector<24x128xf32>
    %148 = arith.cmpf oeq, %15, %147 : vector<24x128xf32>
    %149 = arith.extui %148 : vector<24x128xi1> to vector<24x128xi32>
    %150 = arith.addi %146, %149 : vector<24x128xi32>
    %151 = arith.andi %82, %83 : vector<24x128xi1>
    %152 = arith.andi %84, %85 : vector<24x128xi1>
    %153 = arith.andi %151, %152 : vector<24x128xi1>
    %c2_i32_33 = arith.constant 2 : i32
    %154 = vector.broadcast %c2_i32_33 : i32 to vector<24x128xi32>
    %155 = arith.cmpi eq, %71, %154 : vector<24x128xi32>
    %156 = arith.andi %155, %82 : vector<24x128xi1>
    %c2_i32_34 = arith.constant 2 : i32
    %157 = vector.broadcast %c2_i32_34 : i32 to vector<24x128xi32>
    %158 = arith.cmpi eq, %75, %157 : vector<24x128xi32>
    %159 = arith.andi %158, %83 : vector<24x128xi1>
    %160 = arith.ori %156, %159 : vector<24x128xi1>
    %c2_i32_35 = arith.constant 2 : i32
    %161 = vector.broadcast %c2_i32_35 : i32 to vector<24x128xi32>
    %162 = arith.cmpi eq, %79, %161 : vector<24x128xi32>
    %163 = arith.andi %162, %84 : vector<24x128xi1>
    %164 = arith.ori %160, %163 : vector<24x128xi1>
    %c2_i32_36 = arith.constant 2 : i32
    %165 = vector.broadcast %c2_i32_36 : i32 to vector<24x128xi32>
    %166 = arith.cmpi eq, %81, %165 : vector<24x128xi32>
    %167 = arith.andi %166, %85 : vector<24x128xi1>
    %168 = arith.ori %164, %167 : vector<24x128xi1>
    %c3_i32_37 = arith.constant 3 : i32
    %169 = vector.broadcast %c3_i32_37 : i32 to vector<24x128xi32>
    %170 = arith.cmpi eq, %71, %169 : vector<24x128xi32>
    %171 = arith.andi %170, %82 : vector<24x128xi1>
    %c3_i32_38 = arith.constant 3 : i32
    %172 = vector.broadcast %c3_i32_38 : i32 to vector<24x128xi32>
    %173 = arith.cmpi eq, %75, %172 : vector<24x128xi32>
    %174 = arith.andi %173, %83 : vector<24x128xi1>
    %175 = arith.ori %171, %174 : vector<24x128xi1>
    %c3_i32_39 = arith.constant 3 : i32
    %176 = vector.broadcast %c3_i32_39 : i32 to vector<24x128xi32>
    %177 = arith.cmpi eq, %79, %176 : vector<24x128xi32>
    %178 = arith.andi %177, %84 : vector<24x128xi1>
    %179 = arith.ori %175, %178 : vector<24x128xi1>
    %c3_i32_40 = arith.constant 3 : i32
    %180 = vector.broadcast %c3_i32_40 : i32 to vector<24x128xi32>
    %181 = arith.cmpi eq, %81, %180 : vector<24x128xi32>
    %182 = arith.andi %181, %85 : vector<24x128xi1>
    %183 = arith.ori %179, %182 : vector<24x128xi1>
    %184 = arith.andi %168, %183 : vector<24x128xi1>
    %c3_i32_41 = arith.constant 3 : i32
    %185 = vector.broadcast %c3_i32_41 : i32 to vector<24x128xi32>
    %186 = arith.cmpi eq, %55, %185 : vector<24x128xi32>
    %c2_i32_42 = arith.constant 2 : i32
    %187 = vector.broadcast %c2_i32_42 : i32 to vector<24x128xi32>
    %188 = arith.cmpi eq, %150, %187 : vector<24x128xi32>
    %189 = arith.andi %188, %184 : vector<24x128xi1>
    %c3_i32_43 = arith.constant 3 : i32
    %190 = vector.broadcast %c3_i32_43 : i32 to vector<24x128xi32>
    %191 = arith.cmpi eq, %150, %190 : vector<24x128xi32>
    %192 = arith.andi %191, %186 : vector<24x128xi1>
    %c2_i32_44 = arith.constant 2 : i32
    %193 = vector.broadcast %c2_i32_44 : i32 to vector<24x128xi32>
    %194 = arith.cmpi slt, %150, %193 : vector<24x128xi32>
    %195 = arith.ori %135, %194 : vector<24x128xi1>
    %196 = arith.ori %189, %192 : vector<24x128xi1>
    %197 = arith.ori %195, %196 : vector<24x128xi1>
    %198 = arith.andi %194, %153 : vector<24x128xi1>
    %199 = arith.ori %135, %198 : vector<24x128xi1>
    %200 = arith.ori %189, %192 : vector<24x128xi1>
    %201 = arith.ori %199, %200 : vector<24x128xi1>
    %202 = arith.extui %201 : vector<24x128xi1> to vector<24x128xi32>
    %203 = arith.sitofp %202 : vector<24x128xi32> to vector<24x128xf32>
    %204 = arith.extui %197 : vector<24x128xi1> to vector<24x128xi32>
    %205 = arith.sitofp %204 : vector<24x128xi32> to vector<24x128xf32>
    %206 = vector.extract_strided_slice %203 {offsets = [0, 0], sizes = [4, 128], strides = [1, 1]} : vector<24x128xf32> to vector<4x128xf32>
    %207 = vector.extract_strided_slice %203 {offsets = [4, 0], sizes = [4, 128], strides = [1, 1]} : vector<24x128xf32> to vector<4x128xf32>
    %208 = arith.addf %206, %207 : vector<4x128xf32>
    %209 = vector.extract_strided_slice %203 {offsets = [8, 0], sizes = [4, 128], strides = [1, 1]} : vector<24x128xf32> to vector<4x128xf32>
    %210 = vector.extract_strided_slice %203 {offsets = [12, 0], sizes = [4, 128], strides = [1, 1]} : vector<24x128xf32> to vector<4x128xf32>
    %211 = arith.addf %209, %210 : vector<4x128xf32>
    %212 = arith.addf %208, %211 : vector<4x128xf32>
    %213 = vector.extract_strided_slice %203 {offsets = [16, 0], sizes = [4, 128], strides = [1, 1]} : vector<24x128xf32> to vector<4x128xf32>
    %214 = vector.extract_strided_slice %203 {offsets = [20, 0], sizes = [4, 128], strides = [1, 1]} : vector<24x128xf32> to vector<4x128xf32>
    %215 = arith.addf %213, %214 : vector<4x128xf32>
    %216 = arith.addf %212, %215 : vector<4x128xf32>
    %c0_45 = arith.constant 0 : index
    %c0_46 = arith.constant 0 : index
    %c0_47 = arith.constant 0 : index
    %217 = vector.load %arg3[%c0_45, %c0_46, %c0_47] : memref<2x4x128xf32, #tpu.memory_space<vmem>>, vector<1x4x128xf32>
    %218 = vector.shape_cast %217 : vector<1x4x128xf32> to vector<4x128xf32>
    %219 = vector.shape_cast %216 : vector<4x128xf32> to vector<1x4x128xf32>
    tpu.vector_store %arg3[%c0_45, %c0_46, %c0_47], %219 {strides = array<i32>} : memref<2x4x128xf32, #tpu.memory_space<vmem>>, vector<1x4x128xf32>,
    %220 = vector.extract_strided_slice %205 {offsets = [0, 0], sizes = [4, 128], strides = [1, 1]} : vector<24x128xf32> to vector<4x128xf32>
    %221 = vector.extract_strided_slice %205 {offsets = [4, 0], sizes = [4, 128], strides = [1, 1]} : vector<24x128xf32> to vector<4x128xf32>
    %222 = arith.addf %220, %221 : vector<4x128xf32>
    %223 = vector.extract_strided_slice %205 {offsets = [8, 0], sizes = [4, 128], strides = [1, 1]} : vector<24x128xf32> to vector<4x128xf32>
    %224 = vector.extract_strided_slice %205 {offsets = [12, 0], sizes = [4, 128], strides = [1, 1]} : vector<24x128xf32> to vector<4x128xf32>
    %225 = arith.addf %223, %224 : vector<4x128xf32>
    %226 = arith.addf %222, %225 : vector<4x128xf32>
    %227 = vector.extract_strided_slice %205 {offsets = [16, 0], sizes = [4, 128], strides = [1, 1]} : vector<24x128xf32> to vector<4x128xf32>
    %228 = vector.extract_strided_slice %205 {offsets = [20, 0], sizes = [4, 128], strides = [1, 1]} : vector<24x128xf32> to vector<4x128xf32>
    %229 = arith.addf %227, %228 : vector<4x128xf32>
    %230 = arith.addf %226, %229 : vector<4x128xf32>
    %c1_48 = arith.constant 1 : index
    %c0_49 = arith.constant 0 : index
    %c0_50 = arith.constant 0 : index
    %231 = vector.load %arg3[%c1_48, %c0_49, %c0_50] : memref<2x4x128xf32, #tpu.memory_space<vmem>>, vector<1x4x128xf32>
    %232 = vector.shape_cast %231 : vector<1x4x128xf32> to vector<4x128xf32>
    %233 = vector.shape_cast %230 : vector<4x128xf32> to vector<1x4x128xf32>
    tpu.vector_store %arg3[%c1_48, %c0_49, %c0_50], %233 {strides = array<i32>} : memref<2x4x128xf32, #tpu.memory_space<vmem>>, vector<1x4x128xf32>,
    return
  }
  func.func @transform_0(%arg0: i32) -> (i32, i32, i32) {
    %c0_i32 = arith.constant 0 : i32
    %c0_i32_0 = arith.constant 0 : i32
    %c0_i32_1 = arith.constant 0 : i32
    return %c0_i32, %c0_i32_0, %arg0 : i32, i32, i32
  }
  func.func @transform_1(%arg0: i32) -> (i32, i32, i32) {
    %c0_i32 = arith.constant 0 : i32
    %c0_i32_0 = arith.constant 0 : i32
    %c0_i32_1 = arith.constant 0 : i32
    return %c0_i32, %c0_i32_0, %arg0 : i32, i32, i32
  }
  func.func @transform_2(%arg0: i32) -> (i32, i32, i32) {
    %c0_i32 = arith.constant 0 : i32
    %c0_i32_0 = arith.constant 0 : i32
    %c0_i32_1 = arith.constant 0 : i32
    return %c0_i32, %c0_i32_0, %arg0 : i32, i32, i32
  }
}

</mosaic_0001>

<llo_original>
// kernel: test_recall_pallas.1
$region0: #{test_recall_pallas.1}
  #allocation0 [shape = 'u32[]', space=smem, size = 0x4, offset = 0x4, fixed_abs, tag = 'smem constant byte address 0x4 - core index']
  #allocation1 [shape = 'u32[144,128]{1,0:T(1,128)}', space=vmem, size = 0x12000, scoped, tag = 'internal scratch']
  %s0 = inlined_call_operand.vmem [shape: f32[4,24,128], index: 0, kind: input, shape index: {}]
  %s1 = inlined_call_operand.vmem [shape: f32[4,24,128], index: 1, kind: input, shape index: {}]
  %s2 = inlined_call_operand.vmem [shape: f32[2,4,128], index: 2, kind: output, shape index: {}]
  %s3 = sld [smem:[#allocation0]]
  $region18: #{test_recall_pallas.1} parent=0
    _
  %s5 = ssub.s32 1, %s3
  %s6 = scalar_select 0, %s5, %s3
  // Predicated region
  $region2: #{test_recall_pallas.1} parent=0 // pred_check
    _
  $region3: #{test_recall_pallas.1} parent=0 // pred_check_branch
    %8 = sbr.rel (0) target = $region5
  $region4: #{test_recall_pallas.1} parent=0 // pred_region
    _
  $region5: #{test_recall_pallas.1} parent=0 // pred_fallthru
    _
  // Predicated region
  $region6: #{test_recall_pallas.1} parent=0 // pred_check
    _
  $region7: #{test_recall_pallas.1} parent=0 // pred_check_branch
    %10 = sbr.rel (0) target = $region9
  $region8: #{test_recall_pallas.1} parent=0 // pred_region
    _
  $region9: #{test_recall_pallas.1} parent=0 // pred_fallthru
    _
  %v11 = vld [vmem:[%s0] sm:$0xff]
  %v12 = vld [vmem:[%s0 + $0x8] sm:$0xff]
  %v13 = vld [vmem:[%s0 + $0x10] sm:$0xff]
  %s14 = scalar_lea.vmem %s0, 24
  %v15 = vld [vmem:[%s14] sm:$0xff]
  %v16 = vld [vmem:[%s14 + $0x8] sm:$0xff]
  %v17 = vld [vmem:[%s14 + $0x10] sm:$0xff]
  %s18 = scalar_lea.vmem %s0, 48
  %v19 = vld [vmem:[%s18] sm:$0xff]
  %v20 = vld [vmem:[%s18 + $0x8] sm:$0xff]
  %v21 = vld [vmem:[%s18 + $0x10] sm:$0xff]
  %s22 = scalar_lea.vmem %s0, 72
  %v23 = vld [vmem:[%s22] sm:$0xff]
  %v24 = vld [vmem:[%s22 + $0x8] sm:$0xff]
  %v25 = vld [vmem:[%s22 + $0x10] sm:$0xff]
  %v26 = vld [vmem:[%s1] sm:$0xff]
  %v27 = vld [vmem:[%s1 + $0x8] sm:$0xff]
  %v28 = vld [vmem:[%s1 + $0x10] sm:$0xff]
  %s29 = scalar_lea.vmem %s1, 24
  %v30 = vld [vmem:[%s29] sm:$0xff]
  %v31 = vld [vmem:[%s29 + $0x8] sm:$0xff]
  %v32 = vld [vmem:[%s29 + $0x10] sm:$0xff]
  %s33 = scalar_lea.vmem %s1, 48
  %v34 = vld [vmem:[%s33] sm:$0xff]
  %v35 = vld [vmem:[%s33 + $0x8] sm:$0xff]
  %v36 = vld [vmem:[%s33 + $0x10] sm:$0xff]
  %s37 = scalar_lea.vmem %s1, 72
  %v38 = vld [vmem:[%s37] sm:$0xff]
  %v39 = vld [vmem:[%s37 + $0x8] sm:$0xff]
  %v40 = vld [vmem:[%s37 + $0x10] sm:$0xff]
  %v41 = vmax.f32 %v11, %v15
  %v42 = vmax.f32 %v12, %v16
  %v43 = vmax.f32 %v13, %v17
  %v44 = vmax.f32 %v19, %v23
  %v45 = vmax.f32 %v20, %v24
  %v46 = vmax.f32 %v21, %v25
  %v47 = vmax.f32 %v41, %v44
  %v48 = vmax.f32 %v42, %v45
  %v49 = vmax.f32 %v43, %v46
  %v50 = vsub.f32 %v11, %v47
  %v51 = vsub.f32 %v12, %v48
  %v52 = vsub.f32 %v13, %v49
  %v53 = vmul.f32 %v50, 1.442695
  %v54 = vpow.pop %v53
  %v55 = vmul.f32 %v51, 1.442695
  %v56 = vpow.pop %v55
  %v57 = vmul.f32 %v52, 1.442695
  %v58 = vpow.pop %v57
  %v59 = vsub.f32 %v15, %v47
  %v60 = vsub.f32 %v16, %v48
  %v61 = vsub.f32 %v17, %v49
  %v62 = vmul.f32 %v59, 1.442695
  %v63 = vpow.pop %v62
  %v64 = vmul.f32 %v60, 1.442695
  %v65 = vpow.pop %v64
  %v66 = vmul.f32 %v61, 1.442695
  %v67 = vpow.pop %v66
  %v68 = vsub.f32 %v19, %v47
  %v69 = vsub.f32 %v20, %v48
  %v70 = vsub.f32 %v21, %v49
  %v71 = vmul.f32 %v68, 1.442695
  %v72 = vpow.pop %v71
  %v73 = vmul.f32 %v69, 1.442695
  %v74 = vpow.pop %v73
  %v75 = vmul.f32 %v70, 1.442695
  %v76 = vpow.pop %v75
  %v77 = vsub.f32 %v23, %v47
  %v78 = vsub.f32 %v24, %v48
  %v79 = vsub.f32 %v25, %v49
  %v80 = vmul.f32 %v77, 1.442695
  %v81 = vpow.pop %v80
  %v82 = vmul.f32 %v78, 1.442695
  %v83 = vpow.pop %v82
  %v84 = vmul.f32 %v79, 1.442695
  %v85 = vpow.pop %v84
  %v86 = vadd.f32 %v54, %v63
  %v87 = vadd.f32 %v56, %v65
  %v88 = vadd.f32 %v58, %v67
  %v89 = vadd.f32 %v72, %v81
  %v90 = vadd.f32 %v74, %v83
  %v91 = vadd.f32 %v76, %v85
  %v92 = vadd.f32 %v86, %v89
  %v93 = vadd.f32 %v87, %v90
  %v94 = vadd.f32 %v88, %v91
  %vm95 = vcmp.le.f32.partialorder %v54, %v63
  %vm96 = vcmp.le.f32.partialorder %v56, %v65
  %vm97 = vcmp.le.f32.partialorder %v58, %v67
  %v98 = vsel %vm95, 1, 0
  %v99 = vsel %vm96, 1, 0
  %v100 = vsel %vm97, 1, 0
  %vm101 = vcmp.le.f32.partialorder %v54, %v72
  %vm102 = vcmp.le.f32.partialorder %v56, %v74
  %vm103 = vcmp.le.f32.partialorder %v58, %v76
  %v104 = vsel %vm101, 1, 0
  %v105 = vsel %vm102, 1, 0
  %v106 = vsel %vm103, 1, 0
  %vm107 = vcmp.le.f32.partialorder %v54, %v81
  %vm108 = vcmp.le.f32.partialorder %v56, %v83
  %vm109 = vcmp.le.f32.partialorder %v58, %v85
  %v110 = vsel %vm107, 1, 0
  %v111 = vsel %vm108, 1, 0
  %v112 = vsel %vm109, 1, 0
  %vm113 = vcmp.le.f32.partialorder %v63, %v72
  %vm114 = vcmp.le.f32.partialorder %v65, %v74
  %vm115 = vcmp.le.f32.partialorder %v67, %v76
  %v116 = vsel %vm113, 1, 0
  %v117 = vsel %vm114, 1, 0
  %v118 = vsel %vm115, 1, 0
  %vm119 = vcmp.le.f32.partialorder %v63, %v81
  %vm120 = vcmp.le.f32.partialorder %v65, %v83
  %vm121 = vcmp.le.f32.partialorder %v67, %v85
  %v122 = vsel %vm119, 1, 0
  %v123 = vsel %vm120, 1, 0
  %v124 = vsel %vm121, 1, 0
  %vm125 = vcmp.le.f32.partialorder %v72, %v81
  %vm126 = vcmp.le.f32.partialorder %v74, %v83
  %vm127 = vcmp.le.f32.partialorder %v76, %v85
  %v128 = vsel %vm125, 1, 0
  %v129 = vsel %vm126, 1, 0
  %v130 = vsel %vm127, 1, 0
  %v131 = vsub.s32 3, %v98
  %v132 = vsub.s32 3, %v99
  %v133 = vsub.s32 3, %v100
  %v134 = vadd.s32 %v104, %v110
  %v135 = vadd.s32 %v105, %v111
  %v136 = vadd.s32 %v106, %v112
  %v137 = vsub.s32 %v131, %v134
  %v138 = vsub.s32 %v132, %v135
  %v139 = vsub.s32 %v133, %v136
  %v140 = vadd.s32 %v98, 2
  %v141 = vadd.s32 %v99, 2
  %v142 = vadd.s32 %v100, 2
  %v143 = vadd.s32 %v116, %v122
  %v144 = vadd.s32 %v117, %v123
  %v145 = vadd.s32 %v118, %v124
  %v146 = vsub.s32 %v140, %v143
  %v147 = vsub.s32 %v141, %v144
  %v148 = vsub.s32 %v142, %v145
  %v149 = vsub.s32 1, %v128
  %v150 = vsub.s32 1, %v129
  %v151 = vsub.s32 1, %v130
  %v152 = vadd.s32 %v104, %v116
  %v153 = vadd.s32 %v105, %v117
  %v154 = vadd.s32 %v106, %v118
  %v155 = vadd.s32 %v149, %v152
  %v156 = vadd.s32 %v150, %v153
  %v157 = vadd.s32 %v151, %v154
  %v158 = vadd.s32 %v110, %v122
  %v159 = vadd.s32 %v111, %v123
  %v160 = vadd.s32 %v112, %v124
  %v161 = vadd.s32 %v158, %v128
  %v162 = vadd.s32 %v159, %v129
  %v163 = vadd.s32 %v160, %v130
  %vm164 = vcmp.le.f32.partialorder %v26, %v30
  %vm165 = vcmp.le.f32.partialorder %v27, %v31
  %vm166 = vcmp.le.f32.partialorder %v28, %v32
  %v167 = vsel %vm164, 1, 0
  %v168 = vsel %vm165, 1, 0
  %v169 = vsel %vm166, 1, 0
  %vm170 = vcmp.le.f32.partialorder %v26, %v34
  %vm171 = vcmp.le.f32.partialorder %v27, %v35
  %vm172 = vcmp.le.f32.partialorder %v28, %v36
  %v173 = vsel %vm170, 1, 0
  %v174 = vsel %vm171, 1, 0
  %v175 = vsel %vm172, 1, 0
  %vm176 = vcmp.le.f32.partialorder %v26, %v38
  %vm177 = vcmp.le.f32.partialorder %v27, %v39
  %vm178 = vcmp.le.f32.partialorder %v28, %v40
  %v179 = vsel %vm176, 1, 0
  %v180 = vsel %vm177, 1, 0
  %v181 = vsel %vm178, 1, 0
  %vm182 = vcmp.le.f32.partialorder %v30, %v34
  %vm183 = vcmp.le.f32.partialorder %v31, %v35
  %vm184 = vcmp.le.f32.partialorder %v32, %v36
  %v185 = vsel %vm182, 1, 0
  %v186 = vsel %vm183, 1, 0
  %v187 = vsel %vm184, 1, 0
  %vm188 = vcmp.le.f32.partialorder %v30, %v38
  %vm189 = vcmp.le.f32.partialorder %v31, %v39
  %vm190 = vcmp.le.f32.partialorder %v32, %v40
  %v191 = vsel %vm188, 1, 0
  %v192 = vsel %vm189, 1, 0
  %v193 = vsel %vm190, 1, 0
  %vm194 = vcmp.le.f32.partialorder %v34, %v38
  %vm195 = vcmp.le.f32.partialorder %v35, %v39
  %vm196 = vcmp.le.f32.partialorder %v36, %v40
  %v197 = vsel %vm194, 1, 0
  %v198 = vsel %vm195, 1, 0
  %v199 = vsel %vm196, 1, 0
  %v200 = vsub.s32 3, %v167
  %v201 = vsub.s32 3, %v168
  %v202 = vsub.s32 3, %v169
  %v203 = vadd.s32 %v173, %v179
  %v204 = vadd.s32 %v174, %v180
  %v205 = vadd.s32 %v175, %v181
  %v206 = vsub.s32 %v200, %v203
  %v207 = vsub.s32 %v201, %v204
  %v208 = vsub.s32 %v202, %v205
  %v209 = vadd.s32 %v167, 2
  %v210 = vadd.s32 %v168, 2
  %v211 = vadd.s32 %v169, 2
  %v212 = vadd.s32 %v185, %v191
  %v213 = vadd.s32 %v186, %v192
  %v214 = vadd.s32 %v187, %v193
  %v215 = vsub.s32 %v209, %v212
  %v216 = vsub.s32 %v210, %v213
  %v217 = vsub.s32 %v211, %v214
  %v218 = vsub.s32 1, %v197
  %v219 = vsub.s32 1, %v198
  %v220 = vsub.s32 1, %v199
  %v221 = vadd.s32 %v173, %v185
  %v222 = vadd.s32 %v174, %v186
  %v223 = vadd.s32 %v175, %v187
  %v224 = vadd.s32 %v218, %v221
  %v225 = vadd.s32 %v219, %v222
  %v226 = vadd.s32 %v220, %v223
  %v227 = vadd.s32 %v179, %v191
  %v228 = vadd.s32 %v180, %v192
  %v229 = vadd.s32 %v181, %v193
  %v230 = vadd.s32 %v227, %v197
  %v231 = vadd.s32 %v228, %v198
  %v232 = vadd.s32 %v229, %v199
  %vm233 = vcmp.eq.s32.totalorder %v137, %v206
  %vm234 = vcmp.eq.s32.totalorder %v138, %v207
  %vm235 = vcmp.eq.s32.totalorder %v139, %v208
  %vm236 = vcmp.eq.s32.totalorder %v146, %v215
  %vm237 = vcmp.eq.s32.totalorder %v147, %v216
  %vm238 = vcmp.eq.s32.totalorder %v148, %v217
  %vm239 = vcmp.eq.s32.totalorder %v155, %v224
  %vm240 = vcmp.eq.s32.totalorder %v156, %v225
  %vm241 = vcmp.eq.s32.totalorder %v157, %v226
  %vm242 = vcmp.eq.s32.totalorder %v161, %v230
  %vm243 = vcmp.eq.s32.totalorder %v162, %v231
  %vm244 = vcmp.eq.s32.totalorder %v163, %v232
  %v245 = vmin.f32 %v26, %v30
  %v246 = vmin.f32 %v27, %v31
  %v247 = vmin.f32 %v28, %v32
  %v248 = vmax.f32 %v26, %v30
  %v249 = vmax.f32 %v27, %v31
  %v250 = vmax.f32 %v28, %v32
  %v251 = vmin.f32 %v34, %v38
  %v252 = vmin.f32 %v35, %v39
  %v253 = vmin.f32 %v36, %v40
  %v254 = vmax.f32 %v34, %v38
  %v255 = vmax.f32 %v35, %v39
  %v256 = vmax.f32 %v36, %v40
  %v257 = vmin.f32 %v245, %v251
  %v258 = vmin.f32 %v246, %v252
  %v259 = vmin.f32 %v247, %v253
  %v260 = vmax.f32 %v245, %v251
  %v261 = vmax.f32 %v246, %v252
  %v262 = vmax.f32 %v247, %v253
  %v263 = vmin.f32 %v248, %v254
  %v264 = vmin.f32 %v249, %v255
  %v265 = vmin.f32 %v250, %v256
  %v266 = vmin.f32 %v260, %v263
  %v267 = vmin.f32 %v261, %v264
  %v268 = vmin.f32 %v262, %v265
  %v269 = vmax.f32 %v260, %v263
  %v270 = vmax.f32 %v261, %v264
  %v271 = vmax.f32 %v262, %v265
  %v272 = vsub.f32 %v266, %v257
  %v273 = vsub.f32 %v267, %v258
  %v274 = vsub.f32 %v268, %v259
  %vm275 = vcmp.lt.f32.partialorder %v272, 0.03
  %vm276 = vcmp.lt.f32.partialorder %v273, 0.03
  %vm277 = vcmp.lt.f32.partialorder %v274, 0.03
  %v278 = vsub.f32 %v269, %v266
  %v279 = vsub.f32 %v270, %v267
  %v280 = vsub.f32 %v271, %v268
  %vm281 = vcmp.lt.f32.partialorder %v278, 0.03
  %vm282 = vcmp.lt.f32.partialorder %v279, 0.03
  %vm283 = vcmp.lt.f32.partialorder %v280, 0.03
  %v284 = vmul.f32 %v92, 0.09
  %v285 = vmul.f32 %v93, 0.09
  %v286 = vmul.f32 %v94, 0.09
  %v287 = vmul.f32 %v54, 3.0
  %v288 = vmul.f32 %v56, 3.0
  %v289 = vmul.f32 %v58, 3.0
  %v290 = vmul.f32 %v26, %v92
  %v291 = vmul.f32 %v27, %v93
  %v292 = vmul.f32 %v28, %v94
  %v293 = vsub.f32 %v287, %v290
  %v294 = vsub.f32 %v288, %v291
  %v295 = vsub.f32 %v289, %v292
  %v296 = vand.u32 2147483647, %v293
  %v297 = vand.u32 2147483647, %v294
  %v298 = vand.u32 2147483647, %v295
  %vm299 = vcmp.le.f32.partialorder %v296, %v284
  %vm300 = vcmp.le.f32.partialorder %v297, %v285
  %vm301 = vcmp.le.f32.partialorder %v298, %v286
  %v302 = vmul.f32 %v63, 3.0
  %v303 = vmul.f32 %v65, 3.0
  %v304 = vmul.f32 %v67, 3.0
  %v305 = vmul.f32 %v30, %v92
  %v306 = vmul.f32 %v31, %v93
  %v307 = vmul.f32 %v32, %v94
  %v308 = vsub.f32 %v302, %v305
  %v309 = vsub.f32 %v303, %v306
  %v310 = vsub.f32 %v304, %v307
  %v311 = vand.u32 2147483647, %v308
  %v312 = vand.u32 2147483647, %v309
  %v313 = vand.u32 2147483647, %v310
  %vm314 = vcmp.le.f32.partialorder %v311, %v284
  %vm315 = vcmp.le.f32.partialorder %v312, %v285
  %vm316 = vcmp.le.f32.partialorder %v313, %v286
  %vm317 = vmand %vm299, %vm314
  %vm318 = vmand %vm300, %vm315
  %vm319 = vmand %vm301, %vm316
  %v320 = vmul.f32 %v72, 3.0
  %v321 = vmul.f32 %v74, 3.0
  %v322 = vmul.f32 %v76, 3.0
  %v323 = vmul.f32 %v34, %v92
  %v324 = vmul.f32 %v35, %v93
  %v325 = vmul.f32 %v36, %v94
  %v326 = vsub.f32 %v320, %v323
  %v327 = vsub.f32 %v321, %v324
  %v328 = vsub.f32 %v322, %v325
  %v329 = vand.u32 2147483647, %v326
  %v330 = vand.u32 2147483647, %v327
  %v331 = vand.u32 2147483647, %v328
  %vm332 = vcmp.le.f32.partialorder %v329, %v284
  %vm333 = vcmp.le.f32.partialorder %v330, %v285
  %vm334 = vcmp.le.f32.partialorder %v331, %v286
  %vm335 = vmand %vm317, %vm332
  %vm336 = vmand %vm318, %vm333
  %vm337 = vmand %vm319, %vm334
  %v338 = vmul.f32 %v81, 3.0
  %v339 = vmul.f32 %v83, 3.0
  %v340 = vmul.f32 %v85, 3.0
  %v341 = vmul.f32 %v38, %v92
  %v342 = vmul.f32 %v39, %v93
  %v343 = vmul.f32 %v40, %v94
  %v344 = vsub.f32 %v338, %v341
  %v345 = vsub.f32 %v339, %v342
  %v346 = vsub.f32 %v340, %v343
  %v347 = vand.u32 2147483647, %v344
  %v348 = vand.u32 2147483647, %v345
  %v349 = vand.u32 2147483647, %v346
  %vm350 = vcmp.le.f32.partialorder %v347, %v284
  %vm351 = vcmp.le.f32.partialorder %v348, %v285
  %vm352 = vcmp.le.f32.partialorder %v349, %v286
  %vm353 = vmand %vm335, %vm350
  %vm354 = vmand %vm336, %vm351
  %vm355 = vmand %vm337, %vm352
  %vm356 = vmand %vm275, %vm281
  %vm357 = vmand %vm276, %vm282
  %vm358 = vmand %vm277, %vm283
  %vm359 = vmand %vm275, %vm239
  %vm360 = vmand %vm276, %vm240
  %vm361 = vmand %vm277, %vm241
  %vm362 = vmor %vm356, %vm359
  %vm363 = vmor %vm357, %vm360
  %vm364 = vmor %vm358, %vm361
  %vm365 = vmand %vm281, %vm233
  %vm366 = vmand %vm282, %vm234
  %vm367 = vmand %vm283, %vm235
  %vm368 = vmor %vm362, %vm365
  %vm369 = vmor %vm363, %vm366
  %vm370 = vmor %vm364, %vm367
  %vm371 = vmand %vm353, %vm368
  %vm372 = vmand %vm354, %vm369
  %vm373 = vmand %vm355, %vm370
  %vm374 = vcmp.eq.f32.partialorder %v26, 0.0
  %vm375 = vcmp.eq.f32.partialorder %v27, 0.0
  %vm376 = vcmp.eq.f32.partialorder %v28, 0.0
  %v377 = vsel %vm374, 1, 0
  %v378 = vsel %vm375, 1, 0
  %v379 = vsel %vm376, 1, 0
  %vm380 = vcmp.eq.f32.partialorder %v30, 0.0
  %vm381 = vcmp.eq.f32.partialorder %v31, 0.0
  %vm382 = vcmp.eq.f32.partialorder %v32, 0.0
  %v383 = vsel %vm380, 1, 0
  %v384 = vsel %vm381, 1, 0
  %v385 = vsel %vm382, 1, 0
  %v386 = vadd.s32 %v377, %v383
  %v387 = vadd.s32 %v378, %v384
  %v388 = vadd.s32 %v379, %v385
  %vm389 = vcmp.eq.f32.partialorder %v34, 0.0
  %vm390 = vcmp.eq.f32.partialorder %v35, 0.0
  %vm391 = vcmp.eq.f32.partialorder %v36, 0.0
  %v392 = vsel %vm389, 1, 0
  %v393 = vsel %vm390, 1, 0
  %v394 = vsel %vm391, 1, 0
  %v395 = vadd.s32 %v386, %v392
  %v396 = vadd.s32 %v387, %v393
  %v397 = vadd.s32 %v388, %v394
  %vm398 = vcmp.eq.f32.partialorder %v38, 0.0
  %vm399 = vcmp.eq.f32.partialorder %v39, 0.0
  %vm400 = vcmp.eq.f32.partialorder %v40, 0.0
  %v401 = vsel %vm398, 1, 0
  %v402 = vsel %vm399, 1, 0
  %v403 = vsel %vm400, 1, 0
  %v404 = vadd.s32 %v395, %v401
  %v405 = vadd.s32 %v396, %v402
  %v406 = vadd.s32 %v397, %v403
  %vm407 = vmand %vm233, %vm236
  %vm408 = vmand %vm234, %vm237
  %vm409 = vmand %vm235, %vm238
  %vm410 = vmand %vm239, %vm242
  %vm411 = vmand %vm240, %vm243
  %vm412 = vmand %vm241, %vm244
  %vm413 = vmand %vm407, %vm410
  %vm414 = vmand %vm408, %vm411
  %vm415 = vmand %vm409, %vm412
  %vm416 = vcmp.eq.s32.totalorder %v206, 2
  %vm417 = vcmp.eq.s32.totalorder %v207, 2
  %vm418 = vcmp.eq.s32.totalorder %v208, 2
  %vm419 = vmand %vm416, %vm233
  %vm420 = vmand %vm417, %vm234
  %vm421 = vmand %vm418, %vm235
  %vm422 = vcmp.eq.s32.totalorder %v215, 2
  %vm423 = vcmp.eq.s32.totalorder %v216, 2
  %vm424 = vcmp.eq.s32.totalorder %v217, 2
  %vm425 = vmand %vm422, %vm236
  %vm426 = vmand %vm423, %vm237
  %vm427 = vmand %vm424, %vm238
  %vm428 = vmor %vm419, %vm425
  %vm429 = vmor %vm420, %vm426
  %vm430 = vmor %vm421, %vm427
  %vm431 = vcmp.eq.s32.totalorder %v224, 2
  %vm432 = vcmp.eq.s32.totalorder %v225, 2
  %vm433 = vcmp.eq.s32.totalorder %v226, 2
  %vm434 = vmand %vm431, %vm239
  %vm435 = vmand %vm432, %vm240
  %vm436 = vmand %vm433, %vm241
  %vm437 = vmor %vm428, %vm434
  %vm438 = vmor %vm429, %vm435
  %vm439 = vmor %vm430, %vm436
  %vm440 = vcmp.eq.s32.totalorder %v230, 2
  %vm441 = vcmp.eq.s32.totalorder %v231, 2
  %vm442 = vcmp.eq.s32.totalorder %v232, 2
  %vm443 = vmand %vm440, %vm242
  %vm444 = vmand %vm441, %vm243
  %vm445 = vmand %vm442, %vm244
  %vm446 = vmor %vm437, %vm443
  %vm447 = vmor %vm438, %vm444
  %vm448 = vmor %vm439, %vm445
  %vm449 = vcmp.eq.s32.totalorder %v206, 3
  %vm450 = vcmp.eq.s32.totalorder %v207, 3
  %vm451 = vcmp.eq.s32.totalorder %v208, 3
  %vm452 = vmand %vm449, %vm233
  %vm453 = vmand %vm450, %vm234
  %vm454 = vmand %vm451, %vm235
  %vm455 = vcmp.eq.s32.totalorder %v215, 3
  %vm456 = vcmp.eq.s32.totalorder %v216, 3
  %vm457 = vcmp.eq.s32.totalorder %v217, 3
  %vm458 = vmand %vm455, %vm236
  %vm459 = vmand %vm456, %vm237
  %vm460 = vmand %vm457, %vm238
  %vm461 = vmor %vm452, %vm458
  %vm462 = vmor %vm453, %vm459
  %vm463 = vmor %vm454, %vm460
  %vm464 = vcmp.eq.s32.totalorder %v224, 3
  %vm465 = vcmp.eq.s32.totalorder %v225, 3
  %vm466 = vcmp.eq.s32.totalorder %v226, 3
  %vm467 = vmand %vm464, %vm239
  %vm468 = vmand %vm465, %vm240
  %vm469 = vmand %vm466, %vm241
  %vm470 = vmor %vm461, %vm467
  %vm471 = vmor %vm462, %vm468
  %vm472 = vmor %vm463, %vm469
  %vm473 = vcmp.eq.s32.totalorder %v230, 3
  %vm474 = vcmp.eq.s32.totalorder %v231, 3
  %vm475 = vcmp.eq.s32.totalorder %v232, 3
  %vm476 = vmand %vm473, %vm242
  %vm477 = vmand %vm474, %vm243
  %vm478 = vmand %vm475, %vm244
  %vm479 = vmor %vm470, %vm476
  %vm480 = vmor %vm471, %vm477
  %vm481 = vmor %vm472, %vm478
  %vm482 = vmand %vm446, %vm479
  %vm483 = vmand %vm447, %vm480
  %vm484 = vmand %vm448, %vm481
  %vm485 = vcmp.eq.s32.totalorder %v161, 3
  %vm486 = vcmp.eq.s32.totalorder %v162, 3
  %vm487 = vcmp.eq.s32.totalorder %v163, 3
  %vm488 = vcmp.eq.s32.totalorder %v404, 2
  %vm489 = vcmp.eq.s32.totalorder %v405, 2
  %vm490 = vcmp.eq.s32.totalorder %v406, 2
  %vm491 = vmand %vm488, %vm482
  %vm492 = vmand %vm489, %vm483
  %vm493 = vmand %vm490, %vm484
  %vm494 = vcmp.eq.s32.totalorder %v404, 3
  %vm495 = vcmp.eq.s32.totalorder %v405, 3
  %vm496 = vcmp.eq.s32.totalorder %v406, 3
  %vm497 = vmand %vm494, %vm485
  %vm498 = vmand %vm495, %vm486
  %vm499 = vmand %vm496, %vm487
  %vm500 = vcmp.lt.s32.totalorder %v404, 2
  %vm501 = vcmp.lt.s32.totalorder %v405, 2
  %vm502 = vcmp.lt.s32.totalorder %v406, 2
  %vm503 = vmor %vm371, %vm500
  %vm504 = vmor %vm372, %vm501
  %vm505 = vmor %vm373, %vm502
  %vm506 = vmor %vm491, %vm497
  %vm507 = vmor %vm492, %vm498
  %vm508 = vmor %vm493, %vm499
  %vm509 = vmor %vm503, %vm506
  %vm510 = vmor %vm504, %vm507
  %vm511 = vmor %vm505, %vm508
  %vm512 = vmand %vm500, %vm413
  %vm513 = vmand %vm501, %vm414
  %vm514 = vmand %vm502, %vm415
  %vm515 = vmor %vm371, %vm512
  %vm516 = vmor %vm372, %vm513
  %vm517 = vmor %vm373, %vm514
  %vm518 = vmor %vm515, %vm506
  %vm519 = vmor %vm516, %vm507
  %vm520 = vmor %vm517, %vm508
  %v521 = vsel %vm518, 1, 0
  %v522 = vsel %vm519, 1, 0
  %v523 = vsel %vm520, 1, 0
  %v524 = vcvt.s32.f32 %v521
  %v525 = vcvt.s32.f32 %v522
  %v526 = vcvt.s32.f32 %v523
  %v527 = vsel %vm509, 1, 0
  %v528 = vsel %vm510, 1, 0
  %v529 = vsel %vm511, 1, 0
  %v530 = vcvt.s32.f32 %v527
  %v531 = vcvt.s32.f32 %v528
  %v532 = vcvt.s32.f32 %v529
  %v534 = vrot.slane %v524, 4
  %v536 = vadd.f32 %v524, %v534
  %v538 = vrot.slane %v525, 4
  %v540 = vadd.f32 %v525, %v538
  %v541 = vadd.f32 %v536, %v540
  %v543 = vrot.slane %v526, 4
  %v545 = vadd.f32 %v526, %v543
  %v546 = vadd.f32 %v541, %v545
  %547 = vst [vmem:[%s2] sm:$0xf] %v546
  %v549 = vrot.slane %v530, 4
  %v551 = vadd.f32 %v530, %v549
  %v553 = vrot.slane %v531, 4
  %v555 = vadd.f32 %v531, %v553
  %v556 = vadd.f32 %v551, %v555
  %v558 = vrot.slane %v532, 4
  %v560 = vadd.f32 %v532, %v558
  %v561 = vadd.f32 %v556, %v560
  %s562 = scalar_lea.vmem %s2, 4
  %563 = vst [vmem:[%s562] sm:$0xf] %v561
  // Predicated region
  $region10: #{test_recall_pallas.1} parent=0 // pred_check
    _
  $region11: #{test_recall_pallas.1} parent=0 // pred_check_branch
    %565 = sbr.rel (0) target = $region13
  $region12: #{test_recall_pallas.1} parent=0 // pred_region
    _
  $region13: #{test_recall_pallas.1} parent=0 // pred_fallthru
    _
  // Predicated region
  $region14: #{test_recall_pallas.1} parent=0 // pred_check
    _
  $region15: #{test_recall_pallas.1} parent=0 // pred_check_branch
    %567 = sbr.rel (0) target = $region17
  $region16: #{test_recall_pallas.1} parent=0 // pred_region
    _
  $region17: #{test_recall_pallas.1} parent=0 // pred_fallthru
    _

</llo_original>
